<compile_context>
chip_gen: v7x
topology: tpu7x:2x2x1
jax: 0.10.0
libtpu: 0.0.40
codegen_flags: <defaults>
</compile_context>

<pallas_src>
import jax
import jax.numpy as jnp
from jax.experimental import pallas as pl
from jax.experimental.pallas import tpu as pltpu


def _round_up(x, m):
    return ((x + m - 1) // m) * m


# --------------------------- Pallas kernels ---------------------------------

def _make_mm_kernel(apply_relu, has_residual):
    """out = act(A @ B + bias[col] (+ residual)); K is the last grid axis.

    The output block index is independent of k, so it stays resident in VMEM
    and we accumulate straight into o_ref (no scratch buffer)."""
    def kernel(a_ref, b_ref, bias_ref, *rest):
        if has_residual:
            res_ref, o_ref = rest
        else:
            (o_ref,) = rest

        @pl.when(pl.program_id(2) == 0)
        def _():
            o_ref[...] = jnp.zeros_like(o_ref)

        o_ref[...] += jnp.dot(a_ref[...], b_ref[...],
                              preferred_element_type=jnp.float32)

        @pl.when(pl.program_id(2) == pl.num_programs(2) - 1)
        def _():
            y = o_ref[...] + bias_ref[...]
            if has_residual:
                y = y + res_ref[...]
            if apply_relu:
                y = jnp.maximum(y, 0.0)
            o_ref[...] = y.astype(o_ref.dtype)
    return kernel


_K_BYTES_BUDGET = 8 * 1024 * 1024  # (A+B) bf16 bytes per block before splitting K


def fused_matmul(a, b, bias, residual=None, relu=False):
    """act(a @ b + bias (+ residual)) on the MXU.

    a:        [M, K]  any float (cast to bf16)
    b:        [K, N]  bf16 weights (BN scale pre-folded)
    bias:     [1, N]  f32
    residual: [M, N]  f32 or None
    returns   [M, N]  f32
    """
    M, K = a.shape
    Kb, N = b.shape
    assert K == Kb

    # M tiling (only M ever needs padding).
    Mp = _round_up(M, 8)
    if Mp > 256:
        tm = 256
        Mp = _round_up(M, 256)
    else:
        tm = Mp

    # N tiling: keep >=2 parallel j-steps for megacore when N >= 256.
    if N >= 512 and N % 256 == 0:
        tn = 256
    elif N >= 256 and N % 128 == 0:
        tn = 128
    else:
        tn = N

    # K tiling: collapse K to one grid step whenever the blocks fit VMEM
    # (always true for ResNet-18 shapes); rare fallback splits in 128-multiples.
    if K * (tm + tn) * 2 <= _K_BYTES_BUDGET:
        tk = K
    else:
        tk = 512 if K % 512 == 0 else (256 if K % 256 == 0 else 128)
    Kp = _round_up(K, tk)

    a = a.astype(jnp.bfloat16)
    if Mp != M or Kp != K:
        a = jnp.pad(a, ((0, Mp - M), (0, Kp - K)))
    if Kp != K:  # fallback path only
        b = jnp.pad(b, ((0, Kp - K), (0, 0)))

    inputs = [a, b, bias]
    in_specs = [
        pl.BlockSpec((tm, tk), lambda i, j, k: (i, k)),
        pl.BlockSpec((tk, tn), lambda i, j, k: (k, j)),
        pl.BlockSpec((1, tn), lambda i, j, k: (0, j)),
    ]
    if residual is not None:
        res = residual.astype(jnp.float32)
        if Mp != M:
            res = jnp.pad(res, ((0, Mp - M), (0, 0)))
        inputs.append(res)
        in_specs.append(pl.BlockSpec((tm, tn), lambda i, j, k: (i, j)))

    grid = (Mp // tm, N // tn, Kp // tk)
    out = pl.pallas_call(
        _make_mm_kernel(relu, residual is not None),
        out_shape=jax.ShapeDtypeStruct((Mp, N), jnp.float32),
        grid_spec=pltpu.PrefetchScalarGridSpec(
            num_scalar_prefetch=0,
            grid=grid,
            in_specs=in_specs,
            out_specs=pl.BlockSpec((tm, tn), lambda i, j, k: (i, j)),
        ),
        compiler_params=pltpu.CompilerParams(
            dimension_semantics=("parallel", "parallel", "arbitrary"),
            vmem_limit_bytes=32 * 1024 * 1024),
    )(*inputs)
    return out[:M]


def _maxpool_kernel(x_ref, o_ref):
    o_ref[...] = jnp.max(x_ref[...], axis=0)


def maxpool_3x3_s2_p1(x):
    """3x3 / stride-2 / pad-1 max pool over NHWC, tiled over rows."""
    N, H, W, C = x.shape
    k, stride, pad = 3, 2, 1
    OH = (H + 2 * pad - k) // stride + 1
    OW = (W + 2 * pad - k) // stride + 1
    xp = jnp.pad(x, ((0, 0), (pad, pad), (pad, pad), (0, 0)),
                 constant_values=-jnp.inf)
    views = [xp[:, i:i + stride * OH:stride, j:j + stride * OW:stride, :]
             for i in range(k) for j in range(k)]
    stacked = jnp.stack(views, axis=0).reshape(k * k, N * OH * OW, C)

    M = N * OH * OW
    Mp = _round_up(M, 8)
    if Mp > 2048:
        tm = 1024
        Mp = _round_up(M, tm)
    else:
        tm = Mp
    if Mp != M:
        stacked = jnp.pad(stacked, ((0, 0), (0, Mp - M), (0, 0)))

    out = pl.pallas_call(
        _maxpool_kernel,
        out_shape=jax.ShapeDtypeStruct((Mp, C), x.dtype),
        grid_spec=pltpu.PrefetchScalarGridSpec(
            num_scalar_prefetch=0,
            grid=(Mp // tm,),
            in_specs=[pl.BlockSpec((k * k, tm, C), lambda i: (0, i, 0))],
            out_specs=pl.BlockSpec((tm, C), lambda i: (i, 0)),
        ),
        compiler_params=pltpu.CompilerParams(
            dimension_semantics=("parallel",)),
    )(stacked)
    return out[:M].reshape(N, OH, OW, C)


# --------------------------- JAX glue (layout / patches) --------------------

def im2col(x, kh, kw, stride, pad):
    """x: [N, H, W, C] -> patches [N*OH*OW, KH*KW*C] (kh-major, kw, then c)."""
    N, H, W, C = x.shape
    xp = jnp.pad(x, ((0, 0), (pad, pad), (pad, pad), (0, 0)))
    OH = (H + 2 * pad - kh) // stride + 1
    OW = (W + 2 * pad - kw) // stride + 1
    cols = [xp[:, i:i + stride * OH:stride, j:j + stride * OW:stride, :]
            for i in range(kh) for j in range(kw)]
    patches = jnp.concatenate(cols, axis=-1)
    return patches.reshape(N * OH * OW, kh * kw * C), (N, OH, OW)


def conv_layer(x, cp, relu, residual=None):
    """Conv2d with BN pre-folded into the weights [+ residual] [+ ReLU]."""
    patches, (N, OH, OW) = im2col(x, cp['kh'], cp['kw'], cp['stride'], cp['pad'])
    res2d = None if residual is None else residual.reshape(N * OH * OW, -1)
    y = fused_matmul(patches, cp['w'], cp['b'], residual=res2d, relu=relu)
    return y.reshape(N, OH, OW, cp['w'].shape[1])


def basic_block(x, blk):
    out = conv_layer(x, blk['conv1'], relu=True)
    idn = conv_layer(x, blk['down'], relu=False) if 'down' in blk else x
    # conv2: BN bias + residual add + ReLU fused into the matmul epilogue.
    return conv_layer(out, blk['conv2'], relu=True, residual=idn)


def lidar_encoder_forward(params, x_nchw):
    x = jnp.transpose(x_nchw, (0, 2, 3, 1)).astype(jnp.float32)  # NCHW -> NHWC
    x = conv_layer(x, params['conv1'], relu=True)
    x = maxpool_3x3_s2_p1(x)
    for layer in ('layer1', 'layer2', 'layer3', 'layer4'):
        for blk in params[layer]:
            x = basic_block(x, blk)
    feats = jnp.mean(x, axis=(1, 2))                 # adaptive avg-pool to (1,1)
    return fused_matmul(feats, params['fc_w'], params['fc_b'], relu=False)


# --------------------------- parameters --------------------------------------

def make_resnet18_params(key, in_channels=2, c_dim=64):
    """Raw parameters mirroring the PyTorch module (conv weights + BN stats)."""
    keys = iter(jax.random.split(key, 64))

    def conv(kh, kw, ic, oc):
        std = (2.0 / (kh * kw * ic)) ** 0.5
        return jax.random.normal(next(keys), (kh, kw, ic, oc), jnp.float32) * std

    def bn(c):
        return dict(gamma=jnp.ones((c,), jnp.float32),
                    beta=jnp.zeros((c,), jnp.float32),
                    rm=jnp.zeros((c,), jnp.float32),
                    rv=jnp.ones((c,), jnp.float32))

    def block(ic, oc, stride):
        b = dict(conv1=conv(3, 3, ic, oc), bn1=bn(oc),
                 conv2=conv(3, 3, oc, oc), bn2=bn(oc), stride=stride)
        if stride != 1 or ic != oc:
            b['down_conv'] = conv(1, 1, ic, oc)
            b['down_bn'] = bn(oc)
        return b

    p = {}
    p['conv1'] = conv(7, 7, in_channels, 64)   # replaced conv1, no bias
    p['bn1'] = bn(64)
    p['layer1'] = [block(64, 64, 1), block(64, 64, 1)]
    p['layer2'] = [block(64, 128, 2), block(128, 128, 1)]
    p['layer3'] = [block(128, 256, 2), block(256, 256, 1)]
    p['layer4'] = [block(256, 512, 2), block(512, 512, 1)]
    p['fc_w'] = jax.random.normal(next(keys), (512, c_dim), jnp.float32) * 0.05
    p['fc_b'] = jnp.zeros((c_dim,), jnp.float32)
    return p


def _fold_conv_bn(w, bn, stride, pad, eps=1e-5):
    """Fold eval-mode BN into the conv weights once; reshape for matmul; bf16."""
    kh, kw, ic, oc = w.shape
    scale = bn['gamma'] / jnp.sqrt(bn['rv'] + eps)
    bias = bn['beta'] - bn['rm'] * scale
    wmat = (w * scale).reshape(kh * kw * ic, oc).astype(jnp.bfloat16)
    return dict(w=wmat, b=bias.reshape(1, oc).astype(jnp.float32),
                kh=kh, kw=kw, stride=stride, pad=pad)


def prepare_params(raw):
    """One-time prep: BN folding, weight reshape/cast — no per-forward copies."""
    p = {}
    p['conv1'] = _fold_conv_bn(raw['conv1'], raw['bn1'], stride=2, pad=3)
    for name in ('layer1', 'layer2', 'layer3', 'layer4'):
        blocks = []
        for rb in raw[name]:
            blk = dict(
                conv1=_fold_conv_bn(rb['conv1'], rb['bn1'], rb['stride'], 1),
                conv2=_fold_conv_bn(rb['conv2'], rb['bn2'], 1, 1),
            )
            if 'down_conv' in rb:
                blk['down'] = _fold_conv_bn(rb['down_conv'], rb['down_bn'],
                                            rb['stride'], 0)
            blocks.append(blk)
        p[name] = blocks
    p['fc_w'] = raw['fc_w'].astype(jnp.bfloat16)
    p['fc_b'] = raw['fc_b'].reshape(1, -1).astype(jnp.float32)
    return p


if __name__ == "__main__":
    key = jax.random.PRNGKey(0)
    pkey, xkey = jax.random.split(key)
    raw = make_resnet18_params(pkey, in_channels=2, c_dim=64)
    params = prepare_params(raw)
    # PyTorch-style NCHW input: batch=2, in_channels=2, 32x32 LiDAR BEV grid
    x = jax.random.normal(xkey, (2, 2, 32, 32), jnp.float32)
    out = lidar_encoder_forward(params, x)
    out = jax.block_until_ready(out)
    assert out.shape == (2, 64) and out.dtype == jnp.float32
    print("KERNEL_OK")
</pallas_src>

<mosaic_0001>
module attributes {stable_mosaic.version = 11 : i64} {
  func.func @kernel(%arg0: i32, %arg1: i32, %arg2: i32, %arg3: memref<256x98xbf16, #tpu.memory_space<vmem>>, %arg4: memref<98x64xbf16, #tpu.memory_space<vmem>>, %arg5: memref<1x64xf32, #tpu.memory_space<vmem>>, %arg6: memref<256x64xf32, #tpu.memory_space<vmem>>) attributes {dimension_semantics = [#tpu.dimension_semantics<parallel>, #tpu.dimension_semantics<parallel>, #tpu.dimension_semantics<arbitrary>], iteration_bounds = array<i64: 2, 1, 1>, scalar_prefetch = 0 : i64, scratch_operands = 0 : i64, tpu.core_type = #tpu.core_type<tc>, window_params = [{transform_indices = @transform_0, window_bounds = array<i64: 256, 98>}, {transform_indices = @transform_1, window_bounds = array<i64: 98, 64>}, {transform_indices = @transform_2, window_bounds = array<i64: 1, 64>}, {transform_indices = @transform_3, window_bounds = array<i64: 256, 64>}]} {
    %c0_i32 = arith.constant 0 : i32
    %0 = arith.cmpi eq, %arg2, %c0_i32 : i32
    %1 = arith.extui %0 : i1 to i32
    %c0_i32_0 = arith.constant 0 : i32
    %2 = arith.cmpi ne, %1, %c0_i32_0 : i32
    scf.if %2 {
      %cst_10 = arith.constant 0.000000e+00 : f32
      %12 = vector.broadcast %cst_10 : f32 to vector<256x64xf32>
      %c0_11 = arith.constant 0 : index
      %c0_12 = arith.constant 0 : index
      %13 = vector.load %arg6[%c0_11, %c0_12] : memref<256x64xf32, #tpu.memory_space<vmem>>, vector<256x64xf32>
      tpu.vector_store %arg6[%c0_11, %c0_12], %12 {strides = array<i32>} : memref<256x64xf32, #tpu.memory_space<vmem>>, vector<256x64xf32>,
    } else {
    }
    %c0 = arith.constant 0 : index
    %c0_1 = arith.constant 0 : index
    %3 = vector.load %arg6[%c0, %c0_1] : memref<256x64xf32, #tpu.memory_space<vmem>>, vector<256x64xf32>
    %c0_2 = arith.constant 0 : index
    %c0_3 = arith.constant 0 : index
    %4 = vector.load %arg3[%c0_2, %c0_3] : memref<256x98xbf16, #tpu.memory_space<vmem>>, vector<256x98xbf16>
    %c0_4 = arith.constant 0 : index
    %c0_5 = arith.constant 0 : index
    %5 = vector.load %arg4[%c0_4, %c0_5] : memref<98x64xbf16, #tpu.memory_space<vmem>>, vector<98x64xbf16>
    %cst = arith.constant dense<0.000000e+00> : vector<256x64xf32>
    %6 = tpu.matmul %4, %5, %cst {dimension_numbers = #tpu.dot_dimension_numbers<[1], [0], [0], [1], [0, 0, 1, 1], [], []>} : vector<256x98xbf16>, vector<98x64xbf16>, vector<256x64xf32> -> vector<256x64xf32>
    %7 = arith.addf %3, %6 : vector<256x64xf32>
    %c0_6 = arith.constant 0 : index
    %c0_7 = arith.constant 0 : index
    %8 = vector.load %arg6[%c0_6, %c0_7] : memref<256x64xf32, #tpu.memory_space<vmem>>, vector<256x64xf32>
    tpu.vector_store %arg6[%c0_6, %c0_7], %7 {strides = array<i32>} : memref<256x64xf32, #tpu.memory_space<vmem>>, vector<256x64xf32>,
    %c0_i32_8 = arith.constant 0 : i32
    %9 = arith.cmpi eq, %arg2, %c0_i32_8 : i32
    %10 = arith.extui %9 : i1 to i32
    %c0_i32_9 = arith.constant 0 : i32
    %11 = arith.cmpi ne, %10, %c0_i32_9 : i32
    scf.if %11 {
      %c0_10 = arith.constant 0 : index
      %c0_11 = arith.constant 0 : index
      %12 = vector.load %arg6[%c0_10, %c0_11] : memref<256x64xf32, #tpu.memory_space<vmem>>, vector<256x64xf32>
      %c0_12 = arith.constant 0 : index
      %c0_13 = arith.constant 0 : index
      %13 = vector.load %arg5[%c0_12, %c0_13] : memref<1x64xf32, #tpu.memory_space<vmem>>, vector<1x64xf32>
      %14 = vector.broadcast %13 : vector<1x64xf32> to vector<256x64xf32>
      %15 = arith.addf %12, %14 : vector<256x64xf32>
      %cst_14 = arith.constant 0.000000e+00 : f32
      %16 = vector.broadcast %cst_14 : f32 to vector<256x64xf32>
      %17 = arith.maximumf %15, %16 : vector<256x64xf32>
      %c0_15 = arith.constant 0 : index
      %c0_16 = arith.constant 0 : index
      %18 = vector.load %arg6[%c0_15, %c0_16] : memref<256x64xf32, #tpu.memory_space<vmem>>, vector<256x64xf32>
      tpu.vector_store %arg6[%c0_15, %c0_16], %17 {strides = array<i32>} : memref<256x64xf32, #tpu.memory_space<vmem>>, vector<256x64xf32>,
    } else {
    }
    return
  }
  func.func @transform_0(%arg0: i32, %arg1: i32, %arg2: i32) -> (i32, i32) {
    %c0_i32 = arith.constant 0 : i32
    return %arg0, %arg2 : i32, i32
  }
  func.func @transform_1(%arg0: i32, %arg1: i32, %arg2: i32) -> (i32, i32) {
    %c0_i32 = arith.constant 0 : i32
    return %arg2, %arg1 : i32, i32
  }
  func.func @transform_2(%arg0: i32, %arg1: i32, %arg2: i32) -> (i32, i32) {
    %c0_i32 = arith.constant 0 : i32
    %c0_i32_0 = arith.constant 0 : i32
    return %c0_i32, %arg1 : i32, i32
  }
  func.func @transform_3(%arg0: i32, %arg1: i32, %arg2: i32) -> (i32, i32) {
    %c0_i32 = arith.constant 0 : i32
    return %arg0, %arg1 : i32, i32
  }
}

</mosaic_0001>

<llo_original>
// kernel: tpu_custom_call.1
$region0: #{tpu_custom_call.1}
  #allocation0 [shape = 'u32[]', space=smem, size = 0x4, offset = 0x4, fixed_abs, tag = 'smem constant byte address 0x4 - core index']
  #allocation1 [shape = 'u32[144,128]{1,0:T(1,128)}', space=vmem, size = 0x12000, scoped, tag = 'internal scratch']
  %s0 = inlined_call_operand.vmem [shape: bf16[512,98], index: 0, kind: input, shape index: {}]
  %s1 = inlined_call_operand.vmem [shape: bf16[98,64], index: 1, kind: input, shape index: {}]
  %s2 = inlined_call_operand.vmem [shape: f32[1,64], index: 2, kind: input, shape index: {}]
  %s3 = inlined_call_operand.vmem [shape: f32[512,64], index: 3, kind: output, shape index: {}]
  %s4 = sld [smem:[#allocation0]]
  $region53: #{tpu_custom_call.1} parent=0
    _
  %s6 = ssub.s32 1, %s4
  %s7 = scalar_select 0, %s6, %s4
  loop: start=0, step=1, limit=4
  $region2: #{tpu_custom_call.1} parent=0 // loop_pre_header
    _
  $region3: #{tpu_custom_call.1} parent=0 // loop_header
    %s9 = sphi 0, %s13
    %p10 = scmp.ge.s32.totalorder %s9, 4
    %s16 = sphi 0, %s35
    %s17 = sphi 0, %s31
    %s18 = sphi 0, %s27
    %s19 = sphi 0, %s16
    %s20 = sphi 0, %s17
    %s21 = sphi 0, %s18
    %s22 = sphi 0, %s19
    %s23 = sphi 0, %s20
    %s24 = sphi 0, %s21
    %s40 = sphi 0, %s42
    %s43 = sphi 0, %s40
    %s44 = sphi 0, %s43
    %s60 = sphi 0, %s44
    %s68 = sphi 0, %s70
    %s71 = sphi 0, %s68
    %s72 = sphi 0, %s71
    %s88 = sphi 0, %s72
    %s94 = sphi 0, %s96
    %s97 = sphi 0, %s94
    %s98 = sphi 0, %s97
    %s114 = sphi 0, %s98
    %s122 = sphi 0, %s124
    %s125 = sphi 0, %s122
    %s126 = sphi 0, %s125
    %s142 = sphi 0, %s126
  $region4: #{tpu_custom_call.1} parent=0 // loop_header_branch
    %12 = sbr.rel (%p10) target = $region8
  $region5: #{tpu_custom_call.1} parent=0 // loop_body
    %s14 = ssub.s32 %s9, 1
    %s15 = ssub.s32 %s9, 2
    %s25 = sadd.s32 1, %s18
    %p26 = scmp.ge.s32.totalorder %s25, 1
    %s27 = scalar_select %p26, 0, %s25
    %s28 = sadd.s32 1, %s17
    %s29 = scalar_select %p26, %s28, %s17
    %p30 = scmp.ge.s32.totalorder %s29, 1
    %s31 = scalar_select %p30, 0, %s29
    %s32 = sadd.s32 1, %s16
    %s33 = scalar_select %p30, %s32, %s16
    %p34 = scmp.ge.s32.totalorder %s33, 2
    %s35 = scalar_select %p34, 0, %s33
    %s36 = ssub.s32 %s16, %s35
    %s37 = ssub.s32 %s18, %s27
    %s38 = sor.u32 %s36, %s37
    %p39 = scmp.eq.s32.totalorder %s38, 0
    %s41 = sadd.s32 %s40, 1
    %s42 = scalar_select %p39, %s40, %s41
    %p45 = pneg %p39
    %p46 = scmp.eq.s32.totalorder %s9, 1
    %p47 = por %p45, %p46
    %p48 = scmp.ne.s32.totalorder %s40, %s43
    %p49 = scmp.eq.s32.totalorder %s9, 0
    %p50 = por %p48, %p49
    %p51 = scmp.ne.s32.totalorder %s40, %s43
    %p52 = scmp.eq.s32.totalorder %s14, 1
    %p53 = por %p51, %p52
    %p54 = scmp.ne.s32.totalorder %s43, %s44
    %p55 = scmp.eq.s32.totalorder %s14, 0
    %p56 = por %p54, %p55
    %p57 = scmp.ne.s32.totalorder %s43, %s44
    %p58 = scmp.eq.s32.totalorder %s15, 1
    %p59 = por %p57, %p58
    %p61 = scmp.ne.s32.totalorder %s44, %s60
    %p62 = scmp.eq.s32.totalorder %s15, 0
    %p63 = por %p61, %p62
    %s64 = ssub.s32 %s18, %s27
    %s65 = ssub.s32 %s17, %s31
    %s66 = sor.u32 %s64, %s65
    %p67 = scmp.eq.s32.totalorder %s66, 0
    %s69 = sadd.s32 %s68, 1
    %s70 = scalar_select %p67, %s68, %s69
    %p73 = pneg %p67
    %p74 = scmp.eq.s32.totalorder %s9, 1
    %p75 = por %p73, %p74
    %p76 = scmp.ne.s32.totalorder %s68, %s71
    %p77 = scmp.eq.s32.totalorder %s9, 0
    %p78 = por %p76, %p77
    %p79 = scmp.ne.s32.totalorder %s68, %s71
    %p80 = scmp.eq.s32.totalorder %s14, 1
    %p81 = por %p79, %p80
    %p82 = scmp.ne.s32.totalorder %s71, %s72
    %p83 = scmp.eq.s32.totalorder %s14, 0
    %p84 = por %p82, %p83
    %p85 = scmp.ne.s32.totalorder %s71, %s72
    %p86 = scmp.eq.s32.totalorder %s15, 1
    %p87 = por %p85, %p86
    %p89 = scmp.ne.s32.totalorder %s72, %s88
    %p90 = scmp.eq.s32.totalorder %s15, 0
    %p91 = por %p89, %p90
    %s92 = ssub.s32 %s17, %s31
    %p93 = scmp.eq.s32.totalorder %s92, 0
    %s95 = sadd.s32 %s94, 1
    %s96 = scalar_select %p93, %s94, %s95
    %p99 = pneg %p93
    %p100 = scmp.eq.s32.totalorder %s9, 1
    %p101 = por %p99, %p100
    %p102 = scmp.ne.s32.totalorder %s94, %s97
    %p103 = scmp.eq.s32.totalorder %s9, 0
    %p104 = por %p102, %p103
    %p105 = scmp.ne.s32.totalorder %s94, %s97
    %p106 = scmp.eq.s32.totalorder %s14, 1
    %p107 = por %p105, %p106
    %p108 = scmp.ne.s32.totalorder %s97, %s98
    %p109 = scmp.eq.s32.totalorder %s14, 0
    %p110 = por %p108, %p109
    %p111 = scmp.ne.s32.totalorder %s97, %s98
    %p112 = scmp.eq.s32.totalorder %s15, 1
    %p113 = por %p111, %p112
    %p115 = scmp.ne.s32.totalorder %s98, %s114
    %p116 = scmp.eq.s32.totalorder %s15, 0
    %p117 = por %p115, %p116
    %s118 = ssub.s32 %s16, %s35
    %s119 = ssub.s32 %s17, %s31
    %s120 = sor.u32 %s118, %s119
    %p121 = scmp.eq.s32.totalorder %s120, 0
    %s123 = sadd.s32 %s122, 1
    %s124 = scalar_select %p121, %s122, %s123
    %p127 = pneg %p121
    %p128 = scmp.eq.s32.totalorder %s9, 1
    %p129 = por %p127, %p128
    %p130 = scmp.ne.s32.totalorder %s122, %s125
    %p131 = scmp.eq.s32.totalorder %s9, 0
    %p132 = por %p130, %p131
    %p133 = scmp.ne.s32.totalorder %s122, %s125
    %p134 = scmp.eq.s32.totalorder %s14, 1
    %p135 = por %p133, %p134
    %p136 = scmp.ne.s32.totalorder %s125, %s126
    %p137 = scmp.eq.s32.totalorder %s14, 0
    %p138 = por %p136, %p137
    %p139 = scmp.ne.s32.totalorder %s125, %s126
    %p140 = scmp.eq.s32.totalorder %s15, 1
    %p141 = por %p139, %p140
    %p143 = scmp.ne.s32.totalorder %s126, %s142
    %p144 = scmp.eq.s32.totalorder %s15, 0
    %p145 = por %p143, %p144
    %p146 = scmp.le.s32.totalorder 1, %s9
    %p147 = scmp.lt.s32.totalorder %s9, 3
    %p148 = pnand %p146, %p147
    %p149 = pneg %p148
    // Predicated region
    $region9: #{tpu_custom_call.1} parent=5 // pred_check
      _
    $region10: #{tpu_custom_call.1} parent=5 // pred_check_branch
      %151 = sbr.rel (%p148) target = $region12
    $region11: #{tpu_custom_call.1} parent=5 // pred_region
      %s152 = ssub.s32 %s9, 1
      // Predicated region
      $region13: #{tpu_custom_call.1} parent=11 // pred_check
        %p153 = pneg %p84
      $region14: #{tpu_custom_call.1} parent=11 // pred_check_branch
        %155 = sbr.rel (%p153) target = $region16
      $region15: #{tpu_custom_call.1} parent=11 // pred_region
        %s156 = smul.u32 13, %s21
        %p157 = scmp.lt.s32.totalorder %s156, 12
        %s158 = scalar_select %p157, %s156, 12
        %p159 = scmp.lt.s32.totalorder %s20, 0
        %s160 = scalar_select %p159, %s20, 0
        %s161 = sadd.s32 %s160, %s158
        %s162 = smul.addr %s161, 4
        %s163 = scalar_lea.vmem %s1, %s162
        %s164 = smul.u32 13, %s21
      $region16: #{tpu_custom_call.1} parent=11 // pred_fallthru
        _
      // Predicated region
      $region17: #{tpu_custom_call.1} parent=11 // pred_check
        %p165 = pneg %p110
      $region18: #{tpu_custom_call.1} parent=11 // pred_check_branch
        %167 = sbr.rel (%p165) target = $region20
      $region19: #{tpu_custom_call.1} parent=11 // pred_region
        %p168 = scmp.lt.s32.totalorder %s20, 0
        %s169 = scalar_select %p168, %s20, 0
        %s170 = scalar_lea.vmem %s2, %s169
      $region20: #{tpu_custom_call.1} parent=11 // pred_fallthru
        _
    $region12: #{tpu_custom_call.1} parent=5 // pred_fallthru
      _
    %p171 = scmp.lt.s32.totalorder %s9, 2
    // Predicated region
    $region21: #{tpu_custom_call.1} parent=5 // pred_check
      %p172 = pneg %p171
    $region22: #{tpu_custom_call.1} parent=5 // pred_check_branch
      %174 = sbr.rel (%p172) target = $region24
    $region23: #{tpu_custom_call.1} parent=5 // pred_region
      // Predicated region
      $region25: #{tpu_custom_call.1} parent=23 // pred_check
        %p175 = pneg %p50
      $region26: #{tpu_custom_call.1} parent=23 // pred_check_branch
        %177 = sbr.rel (%p175) target = $region28
      $region27: #{tpu_custom_call.1} parent=23 // pred_region
        %s178 = smul.u32 32, %s16
        %p179 = scmp.lt.s32.totalorder %s178, 63
        %s180 = scalar_select %p179, %s178, 63
        %p181 = scmp.lt.s32.totalorder %s18, 0
        %s182 = scalar_select %p181, %s18, 0
        %s183 = sadd.s32 %s182, %s180
        %s184 = smul.addr %s183, 4
        %s185 = scalar_lea.vmem %s0, %s184
        %s186 = smul.u32 32, %s16
      $region28: #{tpu_custom_call.1} parent=23 // pred_fallthru
        _
    $region24: #{tpu_custom_call.1} parent=5 // pred_fallthru
      _
    %p187 = scmp.le.s32.totalorder 1, %s9
    %p188 = scmp.lt.s32.totalorder %s9, 3
    %p189 = pnand %p187, %p188
    %p190 = pneg %p189
    // Predicated region
    $region29: #{tpu_custom_call.1} parent=5 // pred_check
      _
    $region30: #{tpu_custom_call.1} parent=5 // pred_check_branch
      %192 = sbr.rel (%p189) target = $region32
    $region31: #{tpu_custom_call.1} parent=5 // pred_region
      %s193 = ssub.s32 %s9, 1
      %s194 = smul.u32 32, %s19
      %p195 = scmp.lt.s32.totalorder %s194, 63
      %s196 = scalar_select %p195, %s194, 63
      %p197 = scmp.lt.s32.totalorder %s21, 0
      %s198 = scalar_select %p197, %s21, 0
      %s199 = sadd.s32 %s198, %s196
      %s200 = smul.addr %s199, 4
      %s201 = scalar_lea.vmem %s0, %s200
      %p202 = pneg %p56
      %p203 = pneg %p53
      %s204 = smul.u32 13, %s21
      %p205 = scmp.lt.s32.totalorder %s204, 12
      %s206 = scalar_select %p205, %s204, 12
      %p207 = scmp.lt.s32.totalorder %s20, 0
      %s208 = scalar_select %p207, %s20, 0
      %s209 = sadd.s32 %s208, %s206
      %s210 = smul.addr %s209, 4
      %s211 = scalar_lea.vmem %s1, %s210
      %p212 = pneg %p84
      %p213 = pneg %p81
      %p214 = scmp.lt.s32.totalorder %s20, 0
      %s215 = scalar_select %p214, %s20, 0
      %s216 = scalar_lea.vmem %s2, %s215
      %p217 = pneg %p110
      %p218 = pneg %p107
      %p219 = pneg %p138
      %p220 = pneg %p135
      %s221 = smul.u32 32, %s19
      %p222 = scmp.lt.s32.totalorder %s221, 63
      %s223 = scalar_select %p222, %s221, 63
      %p224 = scmp.lt.s32.totalorder %s20, 0
      %s225 = scalar_select %p224, %s20, 0
      %s226 = sadd.s32 %s225, %s223
      %s227 = smul.addr %s226, 8
      %s228 = scalar_lea.vmem %s3, %s227
      %s229 = smul.u32 32, %s19
      %p230 = scmp.lt.s32.totalorder %s229, 63
      %s231 = scalar_select %p230, %s229, 63
      %p232 = scmp.lt.s32.totalorder %s21, 0
      %s233 = scalar_select %p232, %s21, 0
      %s234 = sadd.s32 %s233, %s231
      %s235 = smul.addr %s234, 4
      %s236 = scalar_lea.vmem %s0, %s235
      %s237 = smul.u32 32, %s19
      %s238 = smul.u32 13, %s21
      %p239 = scmp.lt.s32.totalorder %s238, 12
      %s240 = scalar_select %p239, %s238, 12
      %p241 = scmp.lt.s32.totalorder %s20, 0
      %s242 = scalar_select %p241, %s20, 0
      %s243 = sadd.s32 %s242, %s240
      %s244 = smul.addr %s243, 4
      %s245 = scalar_lea.vmem %s1, %s244
      %s246 = smul.u32 13, %s21
      %p247 = scmp.lt.s32.totalorder %s20, 0
      %s248 = scalar_select %p247, %s20, 0
      %s249 = scalar_lea.vmem %s2, %s248
      %s250 = smul.u32 32, %s19
      %p251 = scmp.lt.s32.totalorder %s250, 63
      %s252 = scalar_select %p251, %s250, 63
      %p253 = scmp.lt.s32.totalorder %s20, 0
      %s254 = scalar_select %p253, %s20, 0
      %s255 = sadd.s32 %s254, %s252
      %s256 = smul.addr %s255, 8
      %s257 = scalar_lea.vmem %s3, %s256
      %s258 = smul.u32 32, %s19
      %p260 = scmp.eq.s32.totalorder %s21, 0
      // Predicated region
      $region33: #{tpu_custom_call.1} parent=31 // pred_check
        %p261 = pneg %p260
      $region34: #{tpu_custom_call.1} parent=31 // pred_check_branch
        %263 = sbr.rel (%p261) target = $region36
      $region35: #{tpu_custom_call.1} parent=31 // pred_region
        %vm264 = vcmask 523264
        %265 = vst.msk [vmem:[%s257] sm:$0xff] %vm264, 0.0
        %266 = vst.msk [vmem:[%s257 + $0x8] sm:$0xff] %vm264, 0.0
        %267 = vst.msk [vmem:[%s257 + $0x10] sm:$0xff] %vm264, 0.0
        %268 = vst.msk [vmem:[%s257 + $0x18] sm:$0xff] %vm264, 0.0
        %269 = vst.msk [vmem:[%s257 + $0x20] sm:$0xff] %vm264, 0.0
        %270 = vst.msk [vmem:[%s257 + $0x28] sm:$0xff] %vm264, 0.0
        %271 = vst.msk [vmem:[%s257 + $0x30] sm:$0xff] %vm264, 0.0
        %272 = vst.msk [vmem:[%s257 + $0x38] sm:$0xff] %vm264, 0.0
        %273 = vst.msk [vmem:[%s257 + $0x40] sm:$0xff] %vm264, 0.0
        %274 = vst.msk [vmem:[%s257 + $0x48] sm:$0xff] %vm264, 0.0
        %275 = vst.msk [vmem:[%s257 + $0x50] sm:$0xff] %vm264, 0.0
        %276 = vst.msk [vmem:[%s257 + $0x58] sm:$0xff] %vm264, 0.0
        %277 = vst.msk [vmem:[%s257 + $0x60] sm:$0xff] %vm264, 0.0
        %278 = vst.msk [vmem:[%s257 + $0x68] sm:$0xff] %vm264, 0.0
        %279 = vst.msk [vmem:[%s257 + $0x70] sm:$0xff] %vm264, 0.0
        %280 = vst.msk [vmem:[%s257 + $0x78] sm:$0xff] %vm264, 0.0
        %281 = vst.msk [vmem:[%s257 + $0x80] sm:$0xff] %vm264, 0.0
        %282 = vst.msk [vmem:[%s257 + $0x88] sm:$0xff] %vm264, 0.0
        %283 = vst.msk [vmem:[%s257 + $0x90] sm:$0xff] %vm264, 0.0
        %284 = vst.msk [vmem:[%s257 + $0x98] sm:$0xff] %vm264, 0.0
        %285 = vst.msk [vmem:[%s257 + $0xa0] sm:$0xff] %vm264, 0.0
        %286 = vst.msk [vmem:[%s257 + $0xa8] sm:$0xff] %vm264, 0.0
        %287 = vst.msk [vmem:[%s257 + $0xb0] sm:$0xff] %vm264, 0.0
        %288 = vst.msk [vmem:[%s257 + $0xb8] sm:$0xff] %vm264, 0.0
        %289 = vst.msk [vmem:[%s257 + $0xc0] sm:$0xff] %vm264, 0.0
        %290 = vst.msk [vmem:[%s257 + $0xc8] sm:$0xff] %vm264, 0.0
        %291 = vst.msk [vmem:[%s257 + $0xd0] sm:$0xff] %vm264, 0.0
        %292 = vst.msk [vmem:[%s257 + $0xd8] sm:$0xff] %vm264, 0.0
        %293 = vst.msk [vmem:[%s257 + $0xe0] sm:$0xff] %vm264, 0.0
        %294 = vst.msk [vmem:[%s257 + $0xe8] sm:$0xff] %vm264, 0.0
        %295 = vst.msk [vmem:[%s257 + $0xf0] sm:$0xff] %vm264, 0.0
        %296 = vst.msk [vmem:[%s257 + $0xf8] sm:$0xff] %vm264, 0.0
      $region36: #{tpu_custom_call.1} parent=31 // pred_fallthru
        _
      %v297 = vld [vmem:[%s257] sm:$0xff]
      %v298 = vld [vmem:[%s257 + $0x8] sm:$0xff]
      %v299 = vld [vmem:[%s257 + $0x10] sm:$0xff]
      %v300 = vld [vmem:[%s257 + $0x18] sm:$0xff]
      %v301 = vld [vmem:[%s257 + $0x20] sm:$0xff]
      %v302 = vld [vmem:[%s257 + $0x28] sm:$0xff]
      %v303 = vld [vmem:[%s257 + $0x30] sm:$0xff]
      %v304 = vld [vmem:[%s257 + $0x38] sm:$0xff]
      %v305 = vld [vmem:[%s257 + $0x40] sm:$0xff]
      %v306 = vld [vmem:[%s257 + $0x48] sm:$0xff]
      %v307 = vld [vmem:[%s257 + $0x50] sm:$0xff]
      %v308 = vld [vmem:[%s257 + $0x58] sm:$0xff]
      %v309 = vld [vmem:[%s257 + $0x60] sm:$0xff]
      %v310 = vld [vmem:[%s257 + $0x68] sm:$0xff]
      %v311 = vld [vmem:[%s257 + $0x70] sm:$0xff]
      %v312 = vld [vmem:[%s257 + $0x78] sm:$0xff]
      %v313 = vld [vmem:[%s257 + $0x80] sm:$0xff]
      %v314 = vld [vmem:[%s257 + $0x88] sm:$0xff]
      %v315 = vld [vmem:[%s257 + $0x90] sm:$0xff]
      %v316 = vld [vmem:[%s257 + $0x98] sm:$0xff]
      %v317 = vld [vmem:[%s257 + $0xa0] sm:$0xff]
      %v318 = vld [vmem:[%s257 + $0xa8] sm:$0xff]
      %v319 = vld [vmem:[%s257 + $0xb0] sm:$0xff]
      %v320 = vld [vmem:[%s257 + $0xb8] sm:$0xff]
      %v321 = vld [vmem:[%s257 + $0xc0] sm:$0xff]
      %v322 = vld [vmem:[%s257 + $0xc8] sm:$0xff]
      %v323 = vld [vmem:[%s257 + $0xd0] sm:$0xff]
      %v324 = vld [vmem:[%s257 + $0xd8] sm:$0xff]
      %v325 = vld [vmem:[%s257 + $0xe0] sm:$0xff]
      %v326 = vld [vmem:[%s257 + $0xe8] sm:$0xff]
      %v327 = vld [vmem:[%s257 + $0xf0] sm:$0xff]
      %v328 = vld [vmem:[%s257 + $0xf8] sm:$0xff]
      %v329 = vld [vmem:[%s236] sm:$0xf]
      %v330 = vld [vmem:[%s236 + $0x4] sm:$0xf]
      %v331 = vld [vmem:[%s236 + $0x8] sm:$0xf]
      %v332 = vld [vmem:[%s236 + $0xc] sm:$0xf]
      %v333 = vld [vmem:[%s236 + $0x10] sm:$0xf]
      %v334 = vld [vmem:[%s236 + $0x14] sm:$0xf]
      %v335 = vld [vmem:[%s236 + $0x18] sm:$0xf]
      %v336 = vld [vmem:[%s236 + $0x1c] sm:$0xf]
      %v337 = vld [vmem:[%s236 + $0x20] sm:$0xf]
      %v338 = vld [vmem:[%s236 + $0x24] sm:$0xf]
      %v339 = vld [vmem:[%s236 + $0x28] sm:$0xf]
      %v340 = vld [vmem:[%s236 + $0x2c] sm:$0xf]
      %v341 = vld [vmem:[%s236 + $0x30] sm:$0xf]
      %v342 = vld [vmem:[%s236 + $0x34] sm:$0xf]
      %v343 = vld [vmem:[%s236 + $0x38] sm:$0xf]
      %v344 = vld [vmem:[%s236 + $0x3c] sm:$0xf]
      %v345 = vld [vmem:[%s236 + $0x40] sm:$0xf]
      %v346 = vld [vmem:[%s236 + $0x44] sm:$0xf]
      %v347 = vld [vmem:[%s236 + $0x48] sm:$0xf]
      %v348 = vld [vmem:[%s236 + $0x4c] sm:$0xf]
      %v349 = vld [vmem:[%s236 + $0x50] sm:$0xf]
      %v350 = vld [vmem:[%s236 + $0x54] sm:$0xf]
      %v351 = vld [vmem:[%s236 + $0x58] sm:$0xf]
      %v352 = vld [vmem:[%s236 + $0x5c] sm:$0xf]
      %v353 = vld [vmem:[%s236 + $0x60] sm:$0xf]
      %v354 = vld [vmem:[%s236 + $0x64] sm:$0xf]
      %v355 = vld [vmem:[%s236 + $0x68] sm:$0xf]
      %v356 = vld [vmem:[%s236 + $0x6c] sm:$0xf]
      %v357 = vld [vmem:[%s236 + $0x70] sm:$0xf]
      %v358 = vld [vmem:[%s236 + $0x74] sm:$0xf]
      %v359 = vld [vmem:[%s236 + $0x78] sm:$0xf]
      %v360 = vld [vmem:[%s236 + $0x7c] sm:$0xf]
      %v361 = vld [vmem:[%s245] sm:$0xf]
      %v362 = vld [vmem:[%s245 + $0x4] sm:$0xf]
      %v363 = vld [vmem:[%s245 + $0x8] sm:$0xf]
      %v364 = vld [vmem:[%s245 + $0xc] sm:$0xf]
      %v365 = vld [vmem:[%s245 + $0x10] sm:$0xf]
      %v366 = vld [vmem:[%s245 + $0x14] sm:$0xf]
      %v367 = vld [vmem:[%s245 + $0x18] sm:$0xf]
      %v368 = vld [vmem:[%s245 + $0x1c] sm:$0xf]
      %v369 = vld [vmem:[%s245 + $0x20] sm:$0xf]
      %v370 = vld [vmem:[%s245 + $0x24] sm:$0xf]
      %v371 = vld [vmem:[%s245 + $0x28] sm:$0xf]
      %v372 = vld [vmem:[%s245 + $0x2c] sm:$0xf]
      %v373 = vld [vmem:[%s245 + $0x30] sm:$0x1]
      %v406 = vunpack.c.l.b16 %v329
      %v407 = vunpack.c.l.b16 %v330
      %v408 = vunpack.c.l.b16 %v331
      %v409 = vunpack.c.l.b16 %v332
      %v410 = vunpack.c.l.b16 %v333
      %v411 = vunpack.c.l.b16 %v334
      %v412 = vunpack.c.l.b16 %v335
      %v413 = vunpack.c.l.b16 %v336
      %v414 = vunpack.c.l.b16 %v337
      %v415 = vunpack.c.l.b16 %v338
      %v416 = vunpack.c.l.b16 %v339
      %v417 = vunpack.c.l.b16 %v340
      %v418 = vunpack.c.l.b16 %v341
      %v419 = vunpack.c.l.b16 %v342
      %v420 = vunpack.c.l.b16 %v343
      %v421 = vunpack.c.l.b16 %v344
      %v422 = vunpack.c.l.b16 %v345
      %v423 = vunpack.c.l.b16 %v346
      %v424 = vunpack.c.l.b16 %v347
      %v425 = vunpack.c.l.b16 %v348
      %v426 = vunpack.c.l.b16 %v349
      %v427 = vunpack.c.l.b16 %v350
      %v428 = vunpack.c.l.b16 %v351
      %v429 = vunpack.c.l.b16 %v352
      %v430 = vunpack.c.l.b16 %v353
      %v431 = vunpack.c.l.b16 %v354
      %v432 = vunpack.c.l.b16 %v355
      %v433 = vunpack.c.l.b16 %v356
      %v434 = vunpack.c.l.b16 %v357
      %v435 = vunpack.c.l.b16 %v358
      %v436 = vunpack.c.l.b16 %v359
      %v437 = vunpack.c.l.b16 %v360
      %v438 = vpack.c.b16 %v407, %v406
      %v439 = vpack.c.b16 %v409, %v408
      %v440 = vpack.c.b16 %v411, %v410
      %v441 = vpack.c.b16 %v413, %v412
      %v442 = vpack.c.b16 %v415, %v414
      %v443 = vpack.c.b16 %v417, %v416
      %v444 = vpack.c.b16 %v419, %v418
      %v445 = vpack.c.b16 %v421, %v420
      %v446 = vpack.c.b16 %v423, %v422
      %v447 = vpack.c.b16 %v425, %v424
      %v448 = vpack.c.b16 %v427, %v426
      %v449 = vpack.c.b16 %v429, %v428
      %v450 = vpack.c.b16 %v431, %v430
      %v451 = vpack.c.b16 %v433, %v432
      %v452 = vpack.c.b16 %v435, %v434
      %v453 = vpack.c.b16 %v437, %v436
      %v467 = vunpack.c.l.b16 %v361
      %v468 = vunpack.c.l.b16 %v362
      %v469 = vunpack.c.l.b16 %v363
      %v470 = vunpack.c.l.b16 %v364
      %v471 = vunpack.c.l.b16 %v365
      %v472 = vunpack.c.l.b16 %v366
      %v473 = vunpack.c.l.b16 %v367
      %v474 = vunpack.c.l.b16 %v368
      %v475 = vunpack.c.l.b16 %v369
      %v476 = vunpack.c.l.b16 %v370
      %v477 = vunpack.c.l.b16 %v371
      %v478 = vunpack.c.l.b16 %v372
      %v479 = vunpack.c.l.b16 %v373
      %v480 = vpack.c.b16 %v468, %v467
      %v481 = vpack.c.b16 %v470, %v469
      %v482 = vpack.c.b16 %v472, %v471
      %v483 = vpack.c.b16 %v474, %v473
      %v484 = vpack.c.b16 %v476, %v475
      %v485 = vpack.c.b16 %v478, %v477
      %v486 = vpack.c.b16 %v479, %v479
      %vm493 = vcmask 801792
      %v495 = vsel %vm493, %v438, 0
      %v498 = vsel %vm493, %v439, 0
      %v501 = vsel %vm493, %v440, 0
      %v504 = vsel %vm493, %v441, 0
      %v507 = vsel %vm493, %v442, 0
      %v510 = vsel %vm493, %v443, 0
      %v513 = vsel %vm493, %v444, 0
      %v516 = vsel %vm493, %v445, 0
      %v519 = vsel %vm493, %v446, 0
      %v522 = vsel %vm493, %v447, 0
      %v525 = vsel %vm493, %v448, 0
      %v528 = vsel %vm493, %v449, 0
      %v531 = vsel %vm493, %v450, 0
      %v534 = vsel %vm493, %v451, 0
      %v537 = vsel %vm493, %v452, 0
      %v540 = vsel %vm493, %v453, 0
      %vm542 = vcmask 1040384
      %v544 = vsel %vm542, %v486, 0
      %546 = vmatprep.subr.bf16.mxu0 0
      %547 = vmatpush1.bf16.msra.mxu0 %v480
      %548 = vmatprep.subr.bf16.mxu0 0
      %549 = vmatpush1.bf16.msra.mxu0 %v481
      %550 = vmatprep.subr.bf16.mxu0 0
      %551 = vmatpush1.bf16.msra.mxu0 %v482
      %552 = vmatprep.subr.bf16.mxu0 0
      %553 = vmatpush1.bf16.msra.mxu0 %v483
      %554 = vmatprep.subr.bf16.mxu0 0
      %555 = vmatpush1.bf16.msra.mxu0 %v484
      %556 = vmatprep.subr.bf16.mxu0 0
      %557 = vmatpush1.bf16.msra.mxu0 %v485
      %558 = vmatprep.subr.bf16.mxu0 0
      %559 = vmatpush1.bf16.msra.mxu0 %v544
      %560 = vmatprep.subr.bf16.mxu0 0
      %561 = vmatpush1.bf16.msra.mxu0 0
      %562 = vmatprep.subr.bf16.mxu0 0
      %563 = vmatpush1.bf16.msra.mxu0 0
      %564 = vmatprep.subr.bf16.mxu0 0
      %565 = vmatpush1.bf16.msra.mxu0 0
      %566 = vmatprep.subr.bf16.mxu0 0
      %567 = vmatpush1.bf16.msra.mxu0 0
      %568 = vmatprep.subr.bf16.mxu0 0
      %569 = vmatpush1.bf16.msra.mxu0 0
      %570 = vmatprep.subr.bf16.mxu0 0
      %571 = vmatpush1.bf16.msra.mxu0 0
      %572 = vmatprep.subr.bf16.mxu0 0
      %573 = vmatpush1.bf16.msra.mxu0 0
      %574 = vmatprep.subr.bf16.mxu0 0
      %575 = vmatpush1.bf16.msra.mxu0 0
      %576 = vmatprep.subr.bf16.mxu0 0
      %577 = vmatpush1.bf16.msra.mxu0 0
      %578 = vmatprep.mubr.bf16.mxu0 0
      %579 = vmatmul.mubr.bf16.gmra.mrb[0].mxu0 %v495
      %v580 = vpop.f32.mrb[0].mxu0
      %v581 = vadd.f32 0.0, %v580
      %v582 = vpop.f32.mrb[0].mxu0
      %v583 = vpop.f32.mrb[0].mxu0
      %v584 = vadd.f32 0.0, %v583
      %v585 = vpop.f32.mrb[0].mxu0
      %586 = vmatprep.mubr.bf16.mxu0 0
      %587 = vmatmul.mubr.bf16.gmra.mrb[0].mxu0 %v498
      %v588 = vpop.f32.mrb[0].mxu0
      %v589 = vadd.f32 0.0, %v588
      %v590 = vpop.f32.mrb[0].mxu0
      %v591 = vpop.f32.mrb[0].mxu0
      %v592 = vadd.f32 0.0, %v591
      %v593 = vpop.f32.mrb[0].mxu0
      %594 = vmatprep.mubr.bf16.mxu0 0
      %595 = vmatmul.mubr.bf16.gmra.mrb[0].mxu0 %v501
      %v596 = vpop.f32.mrb[0].mxu0
      %v597 = vadd.f32 0.0, %v596
      %v598 = vpop.f32.mrb[0].mxu0
      %v599 = vpop.f32.mrb[0].mxu0
      %v600 = vadd.f32 0.0, %v599
      %v601 = vpop.f32.mrb[0].mxu0
      %602 = vmatprep.mubr.bf16.mxu0 0
      %603 = vmatmul.mubr.bf16.gmra.mrb[0].mxu0 %v504
      %v604 = vpop.f32.mrb[0].mxu0
      %v605 = vadd.f32 0.0, %v604
      %v606 = vpop.f32.mrb[0].mxu0
      %v607 = vpop.f32.mrb[0].mxu0
      %v608 = vadd.f32 0.0, %v607
      %v609 = vpop.f32.mrb[0].mxu0
      %610 = vmatprep.mubr.bf16.mxu0 0
      %611 = vmatmul.mubr.bf16.gmra.mrb[0].mxu0 %v507
      %v612 = vpop.f32.mrb[0].mxu0
      %v613 = vadd.f32 0.0, %v612
      %v614 = vpop.f32.mrb[0].mxu0
      %v615 = vpop.f32.mrb[0].mxu0
      %v616 = vadd.f32 0.0, %v615
      %v617 = vpop.f32.mrb[0].mxu0
      %618 = vmatprep.mubr.bf16.mxu0 0
      %619 = vmatmul.mubr.bf16.gmra.mrb[0].mxu0 %v510
      %v620 = vpop.f32.mrb[0].mxu0
      %v621 = vadd.f32 0.0, %v620
      %v622 = vpop.f32.mrb[0].mxu0
      %v623 = vpop.f32.mrb[0].mxu0
      %v624 = vadd.f32 0.0, %v623
      %v625 = vpop.f32.mrb[0].mxu0
      %626 = vmatprep.mubr.bf16.mxu0 0
      %627 = vmatmul.mubr.bf16.gmra.mrb[0].mxu0 %v513
      %v628 = vpop.f32.mrb[0].mxu0
      %v629 = vadd.f32 0.0, %v628
      %v630 = vpop.f32.mrb[0].mxu0
      %v631 = vpop.f32.mrb[0].mxu0
      %v632 = vadd.f32 0.0, %v631
      %v633 = vpop.f32.mrb[0].mxu0
      %634 = vmatprep.mubr.bf16.mxu0 0
      %635 = vmatmul.mubr.bf16.gmra.mrb[0].mxu0 %v516
      %v636 = vpop.f32.mrb[0].mxu0
      %v637 = vadd.f32 0.0, %v636
      %v638 = vpop.f32.mrb[0].mxu0
      %v639 = vpop.f32.mrb[0].mxu0
      %v640 = vadd.f32 0.0, %v639
      %v641 = vpop.f32.mrb[0].mxu0
      %642 = vmatprep.mubr.bf16.mxu0 0
      %643 = vmatmul.mubr.bf16.gmra.mrb[0].mxu0 %v519
      %v644 = vpop.f32.mrb[0].mxu0
      %v645 = vadd.f32 0.0, %v644
      %v646 = vpop.f32.mrb[0].mxu0
      %v647 = vpop.f32.mrb[0].mxu0
      %v648 = vadd.f32 0.0, %v647
      %v649 = vpop.f32.mrb[0].mxu0
      %650 = vmatprep.mubr.bf16.mxu0 0
      %651 = vmatmul.mubr.bf16.gmra.mrb[0].mxu0 %v522
      %v652 = vpop.f32.mrb[0].mxu0
      %v653 = vadd.f32 0.0, %v652
      %v654 = vpop.f32.mrb[0].mxu0
      %v655 = vpop.f32.mrb[0].mxu0
      %v656 = vadd.f32 0.0, %v655
      %v657 = vpop.f32.mrb[0].mxu0
      %658 = vmatprep.mubr.bf16.mxu0 0
      %659 = vmatmul.mubr.bf16.gmra.mrb[0].mxu0 %v525
      %v660 = vpop.f32.mrb[0].mxu0
      %v661 = vadd.f32 0.0, %v660
      %v662 = vpop.f32.mrb[0].mxu0
      %v663 = vpop.f32.mrb[0].mxu0
      %v664 = vadd.f32 0.0, %v663
      %v665 = vpop.f32.mrb[0].mxu0
      %666 = vmatprep.mubr.bf16.mxu0 0
      %667 = vmatmul.mubr.bf16.gmra.mrb[0].mxu0 %v528
      %v668 = vpop.f32.mrb[0].mxu0
      %v669 = vadd.f32 0.0, %v668
      %v670 = vpop.f32.mrb[0].mxu0
      %v671 = vpop.f32.mrb[0].mxu0
      %v672 = vadd.f32 0.0, %v671
      %v673 = vpop.f32.mrb[0].mxu0
      %674 = vmatprep.mubr.bf16.mxu0 0
      %675 = vmatmul.mubr.bf16.gmra.mrb[0].mxu0 %v531
      %v676 = vpop.f32.mrb[0].mxu0
      %v677 = vadd.f32 0.0, %v676
      %v678 = vpop.f32.mrb[0].mxu0
      %v679 = vpop.f32.mrb[0].mxu0
      %v680 = vadd.f32 0.0, %v679
      %v681 = vpop.f32.mrb[0].mxu0
      %682 = vmatprep.mubr.bf16.mxu0 0
      %683 = vmatmul.mubr.bf16.gmra.mrb[0].mxu0 %v534
      %v684 = vpop.f32.mrb[0].mxu0
      %v685 = vadd.f32 0.0, %v684
      %v686 = vpop.f32.mrb[0].mxu0
      %v687 = vpop.f32.mrb[0].mxu0
      %v688 = vadd.f32 0.0, %v687
      %v689 = vpop.f32.mrb[0].mxu0
      %690 = vmatprep.mubr.bf16.mxu0 0
      %691 = vmatmul.mubr.bf16.gmra.mrb[0].mxu0 %v537
      %v692 = vpop.f32.mrb[0].mxu0
      %v693 = vadd.f32 0.0, %v692
      %v694 = vpop.f32.mrb[0].mxu0
      %v695 = vpop.f32.mrb[0].mxu0
      %v696 = vadd.f32 0.0, %v695
      %v697 = vpop.f32.mrb[0].mxu0
      %698 = vmatprep.mubr.bf16.mxu0 0
      %699 = vmatmul.mubr.bf16.gmra.mrb[0].mxu0 %v540
      %v700 = vpop.f32.mrb[0].mxu0
      %v701 = vadd.f32 0.0, %v700
      %v702 = vpop.f32.mrb[0].mxu0
      %v703 = vpop.f32.mrb[0].mxu0
      %v704 = vadd.f32 0.0, %v703
      %v705 = vpop.f32.mrb[0].mxu0
      %706 = vdwg.mxu0
      %v707 = vadd.f32 %v297, %v581
      %v708 = vadd.f32 %v298, %v584
      %v709 = vadd.f32 %v299, %v589
      %v710 = vadd.f32 %v300, %v592
      %v711 = vadd.f32 %v301, %v597
      %v712 = vadd.f32 %v302, %v600
      %v713 = vadd.f32 %v303, %v605
      %v714 = vadd.f32 %v304, %v608
      %v715 = vadd.f32 %v305, %v613
      %v716 = vadd.f32 %v306, %v616
      %v717 = vadd.f32 %v307, %v621
      %v718 = vadd.f32 %v308, %v624
      %v719 = vadd.f32 %v309, %v629
      %v720 = vadd.f32 %v310, %v632
      %v721 = vadd.f32 %v311, %v637
      %v722 = vadd.f32 %v312, %v640
      %v723 = vadd.f32 %v313, %v645
      %v724 = vadd.f32 %v314, %v648
      %v725 = vadd.f32 %v315, %v653
      %v726 = vadd.f32 %v316, %v656
      %v727 = vadd.f32 %v317, %v661
      %v728 = vadd.f32 %v318, %v664
      %v729 = vadd.f32 %v319, %v669
      %v730 = vadd.f32 %v320, %v672
      %v731 = vadd.f32 %v321, %v677
      %v732 = vadd.f32 %v322, %v680
      %v733 = vadd.f32 %v323, %v685
      %v734 = vadd.f32 %v324, %v688
      %v735 = vadd.f32 %v325, %v693
      %v736 = vadd.f32 %v326, %v696
      %v737 = vadd.f32 %v327, %v701
      %v738 = vadd.f32 %v328, %v704
      %vm739 = vcmask 523264
      %740 = vst.msk [vmem:[%s257] sm:$0xff] %vm739, %v707
      %741 = vst.msk [vmem:[%s257 + $0x8] sm:$0xff] %vm739, %v708
      %742 = vst.msk [vmem:[%s257 + $0x10] sm:$0xff] %vm739, %v709
      %743 = vst.msk [vmem:[%s257 + $0x18] sm:$0xff] %vm739, %v710
      %744 = vst.msk [vmem:[%s257 + $0x20] sm:$0xff] %vm739, %v711
      %745 = vst.msk [vmem:[%s257 + $0x28] sm:$0xff] %vm739, %v712
      %746 = vst.msk [vmem:[%s257 + $0x30] sm:$0xff] %vm739, %v713
      %747 = vst.msk [vmem:[%s257 + $0x38] sm:$0xff] %vm739, %v714
      %748 = vst.msk [vmem:[%s257 + $0x40] sm:$0xff] %vm739, %v715
      %749 = vst.msk [vmem:[%s257 + $0x48] sm:$0xff] %vm739, %v716
      %750 = vst.msk [vmem:[%s257 + $0x50] sm:$0xff] %vm739, %v717
      %751 = vst.msk [vmem:[%s257 + $0x58] sm:$0xff] %vm739, %v718
      %752 = vst.msk [vmem:[%s257 + $0x60] sm:$0xff] %vm739, %v719
      %753 = vst.msk [vmem:[%s257 + $0x68] sm:$0xff] %vm739, %v720
      %754 = vst.msk [vmem:[%s257 + $0x70] sm:$0xff] %vm739, %v721
      %755 = vst.msk [vmem:[%s257 + $0x78] sm:$0xff] %vm739, %v722
      %756 = vst.msk [vmem:[%s257 + $0x80] sm:$0xff] %vm739, %v723
      %757 = vst.msk [vmem:[%s257 + $0x88] sm:$0xff] %vm739, %v724
      %758 = vst.msk [vmem:[%s257 + $0x90] sm:$0xff] %vm739, %v725
      %759 = vst.msk [vmem:[%s257 + $0x98] sm:$0xff] %vm739, %v726
      %760 = vst.msk [vmem:[%s257 + $0xa0] sm:$0xff] %vm739, %v727
      %761 = vst.msk [vmem:[%s257 + $0xa8] sm:$0xff] %vm739, %v728
      %762 = vst.msk [vmem:[%s257 + $0xb0] sm:$0xff] %vm739, %v729
      %763 = vst.msk [vmem:[%s257 + $0xb8] sm:$0xff] %vm739, %v730
      %764 = vst.msk [vmem:[%s257 + $0xc0] sm:$0xff] %vm739, %v731
      %765 = vst.msk [vmem:[%s257 + $0xc8] sm:$0xff] %vm739, %v732
      %766 = vst.msk [vmem:[%s257 + $0xd0] sm:$0xff] %vm739, %v733
      %767 = vst.msk [vmem:[%s257 + $0xd8] sm:$0xff] %vm739, %v734
      %768 = vst.msk [vmem:[%s257 + $0xe0] sm:$0xff] %vm739, %v735
      %769 = vst.msk [vmem:[%s257 + $0xe8] sm:$0xff] %vm739, %v736
      %770 = vst.msk [vmem:[%s257 + $0xf0] sm:$0xff] %vm739, %v737
      %771 = vst.msk [vmem:[%s257 + $0xf8] sm:$0xff] %vm739, %v738
      // Predicated region
      $region37: #{tpu_custom_call.1} parent=31 // pred_check
        %p772 = pneg %p260
      $region38: #{tpu_custom_call.1} parent=31 // pred_check_branch
        %774 = sbr.rel (%p772) target = $region40
      $region39: #{tpu_custom_call.1} parent=31 // pred_region
        %v775 = vld [vmem:[%s257] sm:$0xff]
        %v776 = vld [vmem:[%s257 + $0x8] sm:$0xff]
        %v777 = vld [vmem:[%s257 + $0x10] sm:$0xff]
        %v778 = vld [vmem:[%s257 + $0x18] sm:$0xff]
        %v779 = vld [vmem:[%s257 + $0x20] sm:$0xff]
        %v780 = vld [vmem:[%s257 + $0x28] sm:$0xff]
        %v781 = vld [vmem:[%s257 + $0x30] sm:$0xff]
        %v782 = vld [vmem:[%s257 + $0x38] sm:$0xff]
        %v783 = vld [vmem:[%s257 + $0x40] sm:$0xff]
        %v784 = vld [vmem:[%s257 + $0x48] sm:$0xff]
        %v785 = vld [vmem:[%s257 + $0x50] sm:$0xff]
        %v786 = vld [vmem:[%s257 + $0x58] sm:$0xff]
        %v787 = vld [vmem:[%s257 + $0x60] sm:$0xff]
        %v788 = vld [vmem:[%s257 + $0x68] sm:$0xff]
        %v789 = vld [vmem:[%s257 + $0x70] sm:$0xff]
        %v790 = vld [vmem:[%s257 + $0x78] sm:$0xff]
        %v791 = vld [vmem:[%s257 + $0x80] sm:$0xff]
        %v792 = vld [vmem:[%s257 + $0x88] sm:$0xff]
        %v793 = vld [vmem:[%s257 + $0x90] sm:$0xff]
        %v794 = vld [vmem:[%s257 + $0x98] sm:$0xff]
        %v795 = vld [vmem:[%s257 + $0xa0] sm:$0xff]
        %v796 = vld [vmem:[%s257 + $0xa8] sm:$0xff]
        %v797 = vld [vmem:[%s257 + $0xb0] sm:$0xff]
        %v798 = vld [vmem:[%s257 + $0xb8] sm:$0xff]
        %v799 = vld [vmem:[%s257 + $0xc0] sm:$0xff]
        %v800 = vld [vmem:[%s257 + $0xc8] sm:$0xff]
        %v801 = vld [vmem:[%s257 + $0xd0] sm:$0xff]
        %v802 = vld [vmem:[%s257 + $0xd8] sm:$0xff]
        %v803 = vld [vmem:[%s257 + $0xe0] sm:$0xff]
        %v804 = vld [vmem:[%s257 + $0xe8] sm:$0xff]
        %v805 = vld [vmem:[%s257 + $0xf0] sm:$0xff]
        %v806 = vld [vmem:[%s257 + $0xf8] sm:$0xff]
        %v807 = vld [vmem:[%s249] sm:$0x1]
        %v809 = vlaneseq
        %v810 = vshrl.u32 %v809, 7
        %v811 = vsub.s32 0, %v810
        %v812 = vrot.slane %v807, %v811
        %v814 = vadd.f32 %v775, %v812
        %v815 = vadd.f32 %v776, %v812
        %v816 = vadd.f32 %v777, %v812
        %v817 = vadd.f32 %v778, %v812
        %v818 = vadd.f32 %v779, %v812
        %v819 = vadd.f32 %v780, %v812
        %v820 = vadd.f32 %v781, %v812
        %v821 = vadd.f32 %v782, %v812
        %v822 = vadd.f32 %v783, %v812
        %v823 = vadd.f32 %v784, %v812
        %v824 = vadd.f32 %v785, %v812
        %v825 = vadd.f32 %v786, %v812
        %v826 = vadd.f32 %v787, %v812
        %v827 = vadd.f32 %v788, %v812
        %v828 = vadd.f32 %v789, %v812
        %v829 = vadd.f32 %v790, %v812
        %v830 = vadd.f32 %v791, %v812
        %v831 = vadd.f32 %v792, %v812
        %v832 = vadd.f32 %v793, %v812
        %v833 = vadd.f32 %v794, %v812
        %v834 = vadd.f32 %v795, %v812
        %v835 = vadd.f32 %v796, %v812
        %v836 = vadd.f32 %v797, %v812
        %v837 = vadd.f32 %v798, %v812
        %v838 = vadd.f32 %v799, %v812
        %v839 = vadd.f32 %v800, %v812
        %v840 = vadd.f32 %v801, %v812
        %v841 = vadd.f32 %v802, %v812
        %v842 = vadd.f32 %v803, %v812
        %v843 = vadd.f32 %v804, %v812
        %v844 = vadd.f32 %v805, %v812
        %v845 = vadd.f32 %v806, %v812
        %v846 = vmax.f32 %v814, 0.0
        %v847 = vmax.f32 %v815, 0.0
        %v848 = vmax.f32 %v816, 0.0
        %v849 = vmax.f32 %v817, 0.0
        %v850 = vmax.f32 %v818, 0.0
        %v851 = vmax.f32 %v819, 0.0
        %v852 = vmax.f32 %v820, 0.0
        %v853 = vmax.f32 %v821, 0.0
        %v854 = vmax.f32 %v822, 0.0
        %v855 = vmax.f32 %v823, 0.0
        %v856 = vmax.f32 %v824, 0.0
        %v857 = vmax.f32 %v825, 0.0
        %v858 = vmax.f32 %v826, 0.0
        %v859 = vmax.f32 %v827, 0.0
        %v860 = vmax.f32 %v828, 0.0
        %v861 = vmax.f32 %v829, 0.0
        %v862 = vmax.f32 %v830, 0.0
        %v863 = vmax.f32 %v831, 0.0
        %v864 = vmax.f32 %v832, 0.0
        %v865 = vmax.f32 %v833, 0.0
        %v866 = vmax.f32 %v834, 0.0
        %v867 = vmax.f32 %v835, 0.0
        %v868 = vmax.f32 %v836, 0.0
        %v869 = vmax.f32 %v837, 0.0
        %v870 = vmax.f32 %v838, 0.0
        %v871 = vmax.f32 %v839, 0.0
        %v872 = vmax.f32 %v840, 0.0
        %v873 = vmax.f32 %v841, 0.0
        %v874 = vmax.f32 %v842, 0.0
        %v875 = vmax.f32 %v843, 0.0
        %v876 = vmax.f32 %v844, 0.0
        %v877 = vmax.f32 %v845, 0.0
        %878 = vst.msk [vmem:[%s257] sm:$0xff] %vm739, %v846
        %879 = vst.msk [vmem:[%s257 + $0x8] sm:$0xff] %vm739, %v847
        %880 = vst.msk [vmem:[%s257 + $0x10] sm:$0xff] %vm739, %v848
        %881 = vst.msk [vmem:[%s257 + $0x18] sm:$0xff] %vm739, %v849
        %882 = vst.msk [vmem:[%s257 + $0x20] sm:$0xff] %vm739, %v850
        %883 = vst.msk [vmem:[%s257 + $0x28] sm:$0xff] %vm739, %v851
        %884 = vst.msk [vmem:[%s257 + $0x30] sm:$0xff] %vm739, %v852
        %885 = vst.msk [vmem:[%s257 + $0x38] sm:$0xff] %vm739, %v853
        %886 = vst.msk [vmem:[%s257 + $0x40] sm:$0xff] %vm739, %v854
        %887 = vst.msk [vmem:[%s257 + $0x48] sm:$0xff] %vm739, %v855
        %888 = vst.msk [vmem:[%s257 + $0x50] sm:$0xff] %vm739, %v856
        %889 = vst.msk [vmem:[%s257 + $0x58] sm:$0xff] %vm739, %v857
        %890 = vst.msk [vmem:[%s257 + $0x60] sm:$0xff] %vm739, %v858
        %891 = vst.msk [vmem:[%s257 + $0x68] sm:$0xff] %vm739, %v859
        %892 = vst.msk [vmem:[%s257 + $0x70] sm:$0xff] %vm739, %v860
        %893 = vst.msk [vmem:[%s257 + $0x78] sm:$0xff] %vm739, %v861
        %894 = vst.msk [vmem:[%s257 + $0x80] sm:$0xff] %vm739, %v862
        %895 = vst.msk [vmem:[%s257 + $0x88] sm:$0xff] %vm739, %v863
        %896 = vst.msk [vmem:[%s257 + $0x90] sm:$0xff] %vm739, %v864
        %897 = vst.msk [vmem:[%s257 + $0x98] sm:$0xff] %vm739, %v865
        %898 = vst.msk [vmem:[%s257 + $0xa0] sm:$0xff] %vm739, %v866
        %899 = vst.msk [vmem:[%s257 + $0xa8] sm:$0xff] %vm739, %v867
        %900 = vst.msk [vmem:[%s257 + $0xb0] sm:$0xff] %vm739, %v868
        %901 = vst.msk [vmem:[%s257 + $0xb8] sm:$0xff] %vm739, %v869
        %902 = vst.msk [vmem:[%s257 + $0xc0] sm:$0xff] %vm739, %v870
        %903 = vst.msk [vmem:[%s257 + $0xc8] sm:$0xff] %vm739, %v871
        %904 = vst.msk [vmem:[%s257 + $0xd0] sm:$0xff] %vm739, %v872
        %905 = vst.msk [vmem:[%s257 + $0xd8] sm:$0xff] %vm739, %v873
        %906 = vst.msk [vmem:[%s257 + $0xe0] sm:$0xff] %vm739, %v874
        %907 = vst.msk [vmem:[%s257 + $0xe8] sm:$0xff] %vm739, %v875
        %908 = vst.msk [vmem:[%s257 + $0xf0] sm:$0xff] %vm739, %v876
        %909 = vst.msk [vmem:[%s257 + $0xf8] sm:$0xff] %vm739, %v877
      $region40: #{tpu_custom_call.1} parent=31 // pred_fallthru
        _
      %s910 = smul.u32 32, %s19
      %p911 = scmp.lt.s32.totalorder %s910, 63
      %s912 = scalar_select %p911, %s910, 63
      %p913 = scmp.lt.s32.totalorder %s20, 0
      %s914 = scalar_select %p913, %s20, 0
      %s915 = sadd.s32 %s914, %s912
      %s916 = smul.addr %s915, 8
      %s917 = scalar_lea.vmem %s3, %s916
      // Predicated region
      $region41: #{tpu_custom_call.1} parent=31 // pred_check
        %p918 = pneg %p135
      $region42: #{tpu_custom_call.1} parent=31 // pred_check_branch
        %920 = sbr.rel (%p918) target = $region44
      $region43: #{tpu_custom_call.1} parent=31 // pred_region
        %s921 = smul.u32 32, %s19
      $region44: #{tpu_custom_call.1} parent=31 // pred_fallthru
        _
    $region32: #{tpu_custom_call.1} parent=5 // pred_fallthru
      _
    %p922 = scmp.le.s32.totalorder 2, %s9
    // Predicated region
    $region45: #{tpu_custom_call.1} parent=5 // pred_check
      %p923 = pneg %p922
    $region46: #{tpu_custom_call.1} parent=5 // pred_check_branch
      %925 = sbr.rel (%p923) target = $region48
    $region47: #{tpu_custom_call.1} parent=5 // pred_region
      %s926 = ssub.s32 %s9, 2
      // Predicated region
      $region49: #{tpu_custom_call.1} parent=47 // pred_check
        %p927 = pneg %p141
      $region50: #{tpu_custom_call.1} parent=47 // pred_check_branch
        %929 = sbr.rel (%p927) target = $region52
      $region51: #{tpu_custom_call.1} parent=47 // pred_region
        %s930 = smul.u32 32, %s22
        %p931 = scmp.lt.s32.totalorder %s930, 63
        %s932 = scalar_select %p931, %s930, 63
        %p933 = scmp.lt.s32.totalorder %s23, 0
        %s934 = scalar_select %p933, %s23, 0
        %s935 = sadd.s32 %s934, %s932
        %s936 = smul.addr %s935, 8
        %s937 = scalar_lea.vmem %s3, %s936
      $region52: #{tpu_custom_call.1} parent=47 // pred_fallthru
        _
    $region48: #{tpu_custom_call.1} parent=5 // pred_fallthru
      _
  $region6: #{tpu_custom_call.1} parent=0 // loop_footer
    %s13 = sadd.s32 1, %s9
  $region7: #{tpu_custom_call.1} parent=0 // loop_footer_branch
    %8 = sbr.rel target = $region3
  $region8: #{tpu_custom_call.1} parent=0 // loop_exit
    _

</llo_original>
